<compile_context>
chip_gen: v6e
topology: v6e:2x2x1
jax: 0.10.0
libtpu: 0.0.40
codegen_flags: <defaults>
</compile_context>

<pallas_src>
import functools

import numpy as np
import jax
import jax.numpy as jnp
from jax.experimental import pallas as pl
from jax.experimental.pallas import tpu as pltpu


# ------------------------- configuration (small, synthetic) -------------------------
IN_FEATURES = 16
OUT_FEATURES = 4
MIN_NEURONS = 2
MAX_NEURONS = 4
STEP = 2
REPETITIONS = 2
ACT_NAMES = ("relu", "tanh")          # activations=[nn.ReLU(), nn.Tanh()]
BATCH = 8

ACT_FNS = {
    "relu": lambda v: jnp.maximum(v, 0.0),
    "tanh": jnp.tanh,
}

LANE = 128      # vreg lane width
SUBLANE = 8     # f32 sublane count


def _round_up(n, m):
    return ((n + m - 1) // m) * m


# ----------------------------- build_model_ids (host side) --------------------------
def build_model_ids(repetitions, num_activations, min_neurons, max_neurons, step):
    """Numpy port of the torch build_model_ids (only the pieces the forward needs)."""
    neurons_structure = list(range(min_neurons, max_neurons + 1, step))
    num_parallel_mlps = len(neurons_structure) * num_activations * repetitions
    i = 0
    hidden_neuron__model_id = []
    while i < num_parallel_mlps:
        for structure in neurons_structure:
            hidden_neuron__model_id += [i] * structure
            i += 1
    return np.asarray(hidden_neuron__model_id, dtype=np.int32)


def derive_segments(model_ids, num_activations):
    counts = np.bincount(model_ids)
    cumsum = counts.cumsum()
    starts = np.concatenate([[0], cumsum[:-1]]).astype(np.int64)
    ends = (starts + counts).astype(np.int64)
    total_hidden = int(model_ids.shape[0])
    split = total_hidden // num_activations
    act_ids = ((cumsum - 1) // split).astype(np.int64)   # same as torch
    return starts, ends, act_ids, split


def _default_vmem_limit_bytes():
    """~3/4 of this generation's VMEM, capped at 100 MiB (v5e/v6e: ~96 MiB,
    v7x: ~48 MiB). Falls back to a v7x-safe value if the query is unavailable."""
    cap = None
    try:
        info = pltpu.get_tpu_info()
        for attr in ("vmem_capacity_bytes", "vmem_size_bytes", "vmem_bytes"):
            cap = getattr(info, attr, None)
            if cap:
                break
    except Exception:
        cap = None
    if not cap:
        cap = 64 * 1024 * 1024
    return int(min(100 * 1024 * 1024, (cap * 3) // 4))


# ----------------------------------- Pallas kernel ----------------------------------
def parallel_mlps_kernel(x_ref, wh_ref, bh_ref, act_col_ref, wexp_ref, bexp_ref,
                         o_ref, *, act_names):
    # hidden layer: (TB, Fp) @ (Fp, Hp) + (1, Hp) -> (TB, Hp)  [MXU, f32 acc]
    h = jnp.dot(x_ref[...], wh_ref[...],
                preferred_element_type=jnp.float32) + bh_ref[...]

    # apply_activations: full-width masked select driven by per-column act ids.
    # Padded columns are don't-care: h=0 there and their W_exp rows are 0.
    act_col = act_col_ref[...]                       # (1, Hp) int32, broadcasts
    acted = ACT_FNS[act_names[0]](h)
    for i in range(1, len(act_names)):
        acted = jnp.where(act_col == i, ACT_FNS[act_names[i]](h), acted)

    # scatter_add over model ids == dense matmul against the block-diagonal
    # expanded output weight: (TB, Hp) @ (Hp, Np) + (1, Np)  [MXU, f32 acc]
    out = jnp.dot(acted.astype(wexp_ref.dtype), wexp_ref[...],
                  preferred_element_type=jnp.float32) + bexp_ref[...]

    # single lane-dense store (Np is a multiple of 128)
    o_ref[...] = out.astype(o_ref.dtype)


# ----------------------------- per-call (jitted) forward ----------------------------
def _pallas_forward(x, wh, bh, act_col, wexp, bexp, *,
                    act_names, n_cols, num_models, out_features,
                    tile_b, vmem_limit, single_buffer, out_dtype):
    batch, in_features = x.shape
    f_pad, h_pad = wh.shape
    n_pad = wexp.shape[1]
    compute_dtype = wh.dtype
    row_align = 16 if compute_dtype == jnp.bfloat16 else 8

    if tile_b is None:
        # Prefer >=2 batch tiles (v7x has 2 TCs to shard the "parallel" axis
        # across); cap tiles at 512 rows since only x/out scale with tile_b.
        half = (batch + 1) // 2
        tile_b = min(512, max(row_align, _round_up(half, row_align)))
    b_pad = _round_up(batch, tile_b)

    xp = jnp.pad(x.astype(compute_dtype),
                 ((0, b_pad - batch), (0, f_pad - in_features)))

    def const_spec(shape):
        # grid-invariant operand: resident in VMEM, single-buffered if supported
        if single_buffer:
            return pl.BlockSpec(shape, lambda i: (0, 0),
                                pipeline_mode=pl.Buffered(1))
        return pl.BlockSpec(shape, lambda i: (0, 0))

    kernel = functools.partial(parallel_mlps_kernel, act_names=act_names)

    itemsize = jnp.dtype(compute_dtype).itemsize
    flops = 2 * b_pad * (f_pad * h_pad + h_pad * n_pad)
    bytes_accessed = (b_pad * f_pad * itemsize                 # x
                      + (f_pad * h_pad + h_pad * n_pad) * itemsize   # weights
                      + (2 * h_pad + n_pad) * 4                # bh, act ids, bexp
                      + b_pad * n_pad * jnp.dtype(out_dtype).itemsize)  # out

    out_padded = pl.pallas_call(
        kernel,
        out_shape=jax.ShapeDtypeStruct((b_pad, n_pad), out_dtype),
        grid=(b_pad // tile_b,),
        in_specs=[
            pl.BlockSpec((tile_b, f_pad), lambda i: (i, 0)),   # x: tiled over batch
            const_spec((f_pad, h_pad)),                        # Wh^T: resident
            const_spec((1, h_pad)),                            # bh
            const_spec((1, h_pad)),                            # activation ids
            const_spec((h_pad, n_pad)),                        # W_exp: resident
            const_spec((1, n_pad)),                            # b_exp
        ],
        out_specs=pl.BlockSpec((tile_b, n_pad), lambda i: (i, 0)),
        compiler_params=pltpu.CompilerParams(
            dimension_semantics=("parallel",),                 # batch tiles across TCs
            vmem_limit_bytes=vmem_limit),
        cost_estimate=pl.CostEstimate(
            flops=int(flops),
            transcendentals=int(b_pad * h_pad),
            bytes_accessed=int(bytes_accessed)),
    )(xp, wh, bh, act_col, wexp, bexp)

    # strip padding, reshape lane-dense (B, M*O) back to (B, M, O)
    return out_padded[:batch, :n_cols].reshape(batch, num_models, out_features)


# ---------------------- one-time init / cached weights + jit ------------------------
class ParallelMLPsPallas:
    """Hoists all parameter construction and H2D transfer out of the call path.

    __init__ does: segment derivation + asserts, padded/transposed weight
    layouts, block-diagonal W_exp expansion, device upload (once).
    __call__ does: pad x, pallas_call (jitted).
    """

    def __init__(self, hidden_w, hidden_b, out_w, out_b, model_ids, act_names, *,
                 compute_dtype=jnp.bfloat16, out_dtype=jnp.float32,
                 tile_b=None, vmem_limit_bytes=None):
        act_names = tuple(act_names)
        num_activations = len(act_names)
        hidden_w = np.asarray(hidden_w, np.float32)
        hidden_b = np.asarray(hidden_b, np.float32)
        out_w = np.asarray(out_w, np.float32)
        out_b = np.asarray(out_b, np.float32)
        model_ids = np.asarray(model_ids, np.int32)

        total_hidden = int(model_ids.shape[0])
        num_models = int(model_ids.max()) + 1
        out_features = int(out_w.shape[0])
        in_features = int(hidden_w.shape[1])

        starts, ends, _act_ids, split = derive_segments(model_ids, num_activations)
        # Latent assumption of the torch module: every model's hidden segment
        # lies entirely inside one activation chunk.
        for s, e in zip(starts, ends):
            assert (s // split) == ((e - 1) // split), (
                "model hidden segment straddles an activation chunk boundary; "
                "per-chunk activation would diverge from per-model activation")

        # ---- padded, contraction-major parameter layouts (built once) ----
        f_pad = _round_up(in_features, SUBLANE)      # sublane-only pad (no 128 pad)
        h_pad = _round_up(total_hidden, LANE)
        n_cols = num_models * out_features
        n_pad = _round_up(n_cols, LANE)

        wh = np.zeros((f_pad, h_pad), np.float32)
        wh[:in_features, :total_hidden] = hidden_w.T
        bh = np.zeros((1, h_pad), np.float32)
        bh[0, :total_hidden] = hidden_b

        act_col = np.zeros((1, h_pad), np.int32)
        act_col[0, :total_hidden] = np.arange(total_hidden) // split

        # block-diagonal expanded output weight == the scatter_add_ reduction
        onehot = (model_ids[:, None] == np.arange(num_models)[None, :]).astype(np.float32)
        wexp_core = (onehot[:, :, None]
                     * out_w.T[:, None, :]).reshape(total_hidden, n_cols)
        wexp = np.zeros((h_pad, n_pad), np.float32)
        wexp[:total_hidden, :n_cols] = wexp_core
        bexp = np.zeros((1, n_pad), np.float32)
        bexp[0, :n_cols] = out_b.reshape(-1)

        # one-time H2D transfer; MXU operands in compute_dtype, biases in f32
        self.wh = jnp.asarray(wh, compute_dtype)
        self.bh = jnp.asarray(bh, jnp.float32)
        self.act_col = jnp.asarray(act_col)
        self.wexp = jnp.asarray(wexp, compute_dtype)
        self.bexp = jnp.asarray(bexp, jnp.float32)

        self.in_features = in_features
        self.num_models = num_models
        self.out_features = out_features

        if vmem_limit_bytes is None:
            vmem_limit_bytes = _default_vmem_limit_bytes()

        self._cfg = dict(act_names=act_names, n_cols=n_cols, num_models=num_models,
                         out_features=out_features, tile_b=tile_b,
                         vmem_limit=int(vmem_limit_bytes), out_dtype=out_dtype)
        self._fwd = None

    def _build(self, single_buffer):
        return jax.jit(functools.partial(_pallas_forward,
                                         single_buffer=single_buffer, **self._cfg))

    def __call__(self, x):
        args = (x, self.wh, self.bh, self.act_col, self.wexp, self.bexp)
        if self._fwd is None:
            last_err = None
            # Prefer single-buffered resident weights (pl.Buffered(1)); fall back
            # to default double-buffering if this stack does not honor it.
            for sb in (True, False):
                try:
                    fwd = self._build(sb)
                    out = fwd(*args)
                    jax.block_until_ready(out)
                    self._fwd = fwd
                    return out
                except Exception as e:      # pragma: no cover - env dependent
                    last_err = e
            raise last_err
        return self._fwd(*args)


# -------------------------------- plain-JAX reference -------------------------------
def reference_forward(x, hidden_w, hidden_b, out_w, out_b,
                      model_ids, num_models, num_activations, act_names):
    h = x @ hidden_w.T + hidden_b[None, :]
    total_hidden = h.shape[1]
    split = total_hidden // num_activations
    chunks = [ACT_FNS[act_names[i]](h[:, i * split:(i + 1) * split])
              for i in range(num_activations)]
    h = jnp.concatenate(chunks, axis=1)
    prod = h[:, :, None] * out_w.T[None, :, :]                       # (B, H, O)
    onehot = (np.asarray(model_ids)[None, :]
              == np.arange(num_models)[:, None]).astype(np.float32)
    out = jnp.einsum("mh,bho->bmo", jnp.asarray(onehot), prod) + out_b[None, :, :]
    return out


# -------------------------------------- main -----------------------------------------
if __name__ == "__main__":
    num_activations = len(ACT_NAMES)
    model_ids = build_model_ids(REPETITIONS, num_activations,
                                MIN_NEURONS, MAX_NEURONS, STEP)

    total_hidden = int(model_ids.shape[0])          # 24
    num_models = int(model_ids.max()) + 1           # 8

    # deterministic parameter init (kaiming-uniform-like bounds, synthetic)
    key = jax.random.PRNGKey(0)
    k_hw, k_hb, k_ow, k_ob, k_x = jax.random.split(key, 5)
    b_hidden = 1.0 / np.sqrt(IN_FEATURES)
    hidden_w = jax.random.uniform(k_hw, (total_hidden, IN_FEATURES), jnp.float32,
                                  minval=-b_hidden, maxval=b_hidden)
    hidden_b = jax.random.uniform(k_hb, (total_hidden,), jnp.float32,
                                  minval=-b_hidden, maxval=b_hidden)
    b_out = 1.0 / np.sqrt(max(MIN_NEURONS, 1))
    out_w = jax.random.uniform(k_ow, (OUT_FEATURES, total_hidden), jnp.float32,
                               minval=-b_out, maxval=b_out)
    out_b = jax.random.uniform(k_ob, (num_models, OUT_FEATURES), jnp.float32,
                               minval=-b_out, maxval=b_out)

    x = jax.random.normal(k_x, (BATCH, IN_FEATURES), jnp.float32)

    # one-time init (all host-side layout work + H2D), then jitted calls
    mlps = ParallelMLPsPallas(hidden_w, hidden_b, out_w, out_b, model_ids, ACT_NAMES)

    out = mlps(x)                       # first call: compiles + runs
    out = jax.block_until_ready(out)
    out2 = jax.block_until_ready(mlps(x))   # cached jitted path

    ref = reference_forward(x, hidden_w, hidden_b, out_w, out_b,
                            model_ids, num_models, num_activations, ACT_NAMES)
    ref = jax.block_until_ready(ref)

    assert out.shape == (BATCH, num_models, OUT_FEATURES), out.shape
    # bf16 MXU operands vs f32 reference -> relaxed tolerance (review guidance)
    np.testing.assert_allclose(np.asarray(out), np.asarray(ref), rtol=3e-2, atol=3e-2)
    np.testing.assert_allclose(np.asarray(out2), np.asarray(out), rtol=0, atol=0)
    print("KERNEL_OK")
</pallas_src>

<mosaic_0001>
module attributes {stable_mosaic.version = 11 : i64} {
  func.func @parallel_mlps_kernel(%arg0: i32, %arg1: memref<16x16xbf16, #tpu.memory_space<vmem>>, %arg2: memref<16x128xbf16, #tpu.memory_space<vmem>>, %arg3: memref<1x128xf32, #tpu.memory_space<vmem>>, %arg4: memref<1x128xi32, #tpu.memory_space<vmem>>, %arg5: memref<128x128xbf16, #tpu.memory_space<vmem>>, %arg6: memref<1x128xf32, #tpu.memory_space<vmem>>, %arg7: memref<16x128xf32, #tpu.memory_space<vmem>>) attributes {dimension_semantics = [#tpu.dimension_semantics<parallel>], iteration_bounds = array<i64: 1>, scalar_prefetch = 0 : i64, scratch_operands = 0 : i64, tpu.core_type = #tpu.core_type<tc>, window_params = [{transform_indices = @transform_0, window_bounds = array<i64: 16, 16>}, {pipeline_mode = #tpu.pipeline_mode<synchronous>, transform_indices = @transform_1, window_bounds = array<i64: 16, 128>}, {pipeline_mode = #tpu.pipeline_mode<synchronous>, transform_indices = @transform_2, window_bounds = array<i64: 1, 128>}, {pipeline_mode = #tpu.pipeline_mode<synchronous>, transform_indices = @transform_3, window_bounds = array<i64: 1, 128>}, {pipeline_mode = #tpu.pipeline_mode<synchronous>, transform_indices = @transform_4, window_bounds = array<i64: 128, 128>}, {pipeline_mode = #tpu.pipeline_mode<synchronous>, transform_indices = @transform_5, window_bounds = array<i64: 1, 128>}, {transform_indices = @transform_6, window_bounds = array<i64: 16, 128>}]} {
    %c0 = arith.constant 0 : index
    %c0_0 = arith.constant 0 : index
    %0 = vector.load %arg1[%c0, %c0_0] : memref<16x16xbf16, #tpu.memory_space<vmem>>, vector<16x16xbf16>
    %c0_1 = arith.constant 0 : index
    %c0_2 = arith.constant 0 : index
    %1 = vector.load %arg2[%c0_1, %c0_2] : memref<16x128xbf16, #tpu.memory_space<vmem>>, vector<16x128xbf16>
    %cst = arith.constant dense<0.000000e+00> : vector<16x128xf32>
    %2 = tpu.matmul %0, %1, %cst {dimension_numbers = #tpu.dot_dimension_numbers<[1], [0], [0], [1], [0, 0, 1, 1], [], []>} : vector<16x16xbf16>, vector<16x128xbf16>, vector<16x128xf32> -> vector<16x128xf32>
    %c0_3 = arith.constant 0 : index
    %c0_4 = arith.constant 0 : index
    %3 = vector.load %arg3[%c0_3, %c0_4] : memref<1x128xf32, #tpu.memory_space<vmem>>, vector<1x128xf32>
    %4 = vector.broadcast %3 : vector<1x128xf32> to vector<16x128xf32>
    %5 = arith.addf %2, %4 : vector<16x128xf32>
    %c0_5 = arith.constant 0 : index
    %c0_6 = arith.constant 0 : index
    %6 = vector.load %arg4[%c0_5, %c0_6] : memref<1x128xi32, #tpu.memory_space<vmem>>, vector<1x128xi32>
    %cst_7 = arith.constant 0.000000e+00 : f32
    %7 = vector.broadcast %cst_7 : f32 to vector<16x128xf32>
    %8 = arith.maximumf %5, %7 : vector<16x128xf32>
    %c1_i32 = arith.constant 1 : i32
    %9 = vector.broadcast %c1_i32 : i32 to vector<1x128xi32>
    %10 = arith.cmpi eq, %6, %9 : vector<1x128xi32>
    %11 = math.tanh %5 : vector<16x128xf32>
    %12 = vector.shape_cast %10 : vector<1x128xi1> to vector<1x128xi1>
    %13 = vector.broadcast %12 : vector<1x128xi1> to vector<16x128xi1>
    %14 = arith.select %13, %11, %8 : vector<16x128xi1>, vector<16x128xf32>
    %15 = arith.truncf %14 : vector<16x128xf32> to vector<16x128xbf16>
    %c0_8 = arith.constant 0 : index
    %c0_9 = arith.constant 0 : index
    %16 = vector.load %arg5[%c0_8, %c0_9] : memref<128x128xbf16, #tpu.memory_space<vmem>>, vector<128x128xbf16>
    %cst_10 = arith.constant dense<0.000000e+00> : vector<16x128xf32>
    %17 = tpu.matmul %15, %16, %cst_10 {dimension_numbers = #tpu.dot_dimension_numbers<[1], [0], [0], [1], [0, 0, 1, 1], [], []>} : vector<16x128xbf16>, vector<128x128xbf16>, vector<16x128xf32> -> vector<16x128xf32>
    %c0_11 = arith.constant 0 : index
    %c0_12 = arith.constant 0 : index
    %18 = vector.load %arg6[%c0_11, %c0_12] : memref<1x128xf32, #tpu.memory_space<vmem>>, vector<1x128xf32>
    %19 = vector.broadcast %18 : vector<1x128xf32> to vector<16x128xf32>
    %20 = arith.addf %17, %19 : vector<16x128xf32>
    %c0_13 = arith.constant 0 : index
    %c0_14 = arith.constant 0 : index
    %21 = vector.load %arg7[%c0_13, %c0_14] : memref<16x128xf32, #tpu.memory_space<vmem>>, vector<16x128xf32>
    tpu.vector_store %arg7[%c0_13, %c0_14], %20 {strides = array<i32>} : memref<16x128xf32, #tpu.memory_space<vmem>>, vector<16x128xf32>,
    return
  }
  func.func @transform_0(%arg0: i32) -> (i32, i32) {
    %c0_i32 = arith.constant 0 : i32
    %c0_i32_0 = arith.constant 0 : i32
    return %arg0, %c0_i32 : i32, i32
  }
  func.func @transform_1(%arg0: i32) -> (i32, i32) {
    %c0_i32 = arith.constant 0 : i32
    %c0_i32_0 = arith.constant 0 : i32
    %c0_i32_1 = arith.constant 0 : i32
    return %c0_i32, %c0_i32_0 : i32, i32
  }
  func.func @transform_2(%arg0: i32) -> (i32, i32) {
    %c0_i32 = arith.constant 0 : i32
    %c0_i32_0 = arith.constant 0 : i32
    %c0_i32_1 = arith.constant 0 : i32
    return %c0_i32, %c0_i32_0 : i32, i32
  }
  func.func @transform_3(%arg0: i32) -> (i32, i32) {
    %c0_i32 = arith.constant 0 : i32
    %c0_i32_0 = arith.constant 0 : i32
    %c0_i32_1 = arith.constant 0 : i32
    return %c0_i32, %c0_i32_0 : i32, i32
  }
  func.func @transform_4(%arg0: i32) -> (i32, i32) {
    %c0_i32 = arith.constant 0 : i32
    %c0_i32_0 = arith.constant 0 : i32
    %c0_i32_1 = arith.constant 0 : i32
    return %c0_i32, %c0_i32_0 : i32, i32
  }
  func.func @transform_5(%arg0: i32) -> (i32, i32) {
    %c0_i32 = arith.constant 0 : i32
    %c0_i32_0 = arith.constant 0 : i32
    %c0_i32_1 = arith.constant 0 : i32
    return %c0_i32, %c0_i32_0 : i32, i32
  }
  func.func @transform_6(%arg0: i32) -> (i32, i32) {
    %c0_i32 = arith.constant 0 : i32
    %c0_i32_0 = arith.constant 0 : i32
    return %arg0, %c0_i32 : i32, i32
  }
}

module attributes {stable_mosaic.version = 11 : i64} {
  func.func @parallel_mlps_kernel(%arg0: i32, %arg1: memref<16x16xbf16, #tpu.memory_space<vmem>>, %arg2: memref<16x128xbf16, #tpu.memory_space<vmem>>, %arg3: memref<1x128xf32, #tpu.memory_space<vmem>>, %arg4: memref<1x128xi32, #tpu.memory_space<vmem>>, %arg5: memref<128x128xbf16, #tpu.memory_space<vmem>>, %arg6: memref<1x128xf32, #tpu.memory_space<vmem>>, %arg7: memref<16x128xf32, #tpu.memory_space<vmem>>) attributes {dimension_semantics = [#tpu.dimension_semantics<parallel>], iteration_bounds = array<i64: 1>, scalar_prefetch = 0 : i64, scratch_operands = 0 : i64, tpu.core_type = #tpu.core_type<tc>, window_params = [{transform_indices = @transform_0, window_bounds = array<i64: 16, 16>}, {pipeline_mode = #tpu.pipeline_mode<synchronous>, transform_indices = @transform_1, window_bounds = array<i64: 16, 128>}, {pipeline_mode = #tpu.pipeline_mode<synchronous>, transform_indices = @transform_2, window_bounds = array<i64: 1, 128>}, {pipeline_mode = #tpu.pipeline_mode<synchronous>, transform_indices = @transform_3, window_bounds = array<i64: 1, 128>}, {pipeline_mode = #tpu.pipeline_mode<synchronous>, transform_indices = @transform_4, window_bounds = array<i64: 128, 128>}, {pipeline_mode = #tpu.pipeline_mode<synchronous>, transform_indices = @transform_5, window_bounds = array<i64: 1, 128>}, {transform_indices = @transform_6, window_bounds = array<i64: 16, 128>}]} {
    %c0 = arith.constant 0 : index
    %c0_0 = arith.constant 0 : index
    %0 = vector.load %arg1[%c0, %c0_0] : memref<16x16xbf16, #tpu.memory_space<vmem>>, vector<16x16xbf16>
    %c0_1 = arith.constant 0 : index
    %c0_2 = arith.constant 0 : index
    %1 = vector.load %arg2[%c0_1, %c0_2] : memref<16x128xbf16, #tpu.memory_space<vmem>>, vector<16x128xbf16>
    %cst = arith.constant dense<0.000000e+00> : vector<16x128xf32>
    %2 = tpu.matmul %0, %1, %cst {dimension_numbers = #tpu.dot_dimension_numbers<[1], [0], [0], [1], [0, 0, 1, 1], [], []>} : vector<16x16xbf16>, vector<16x128xbf16>, vector<16x128xf32> -> vector<16x128xf32>
    %c0_3 = arith.constant 0 : index
    %c0_4 = arith.constant 0 : index
    %3 = vector.load %arg3[%c0_3, %c0_4] : memref<1x128xf32, #tpu.memory_space<vmem>>, vector<1x128xf32>
    %4 = vector.broadcast %3 : vector<1x128xf32> to vector<16x128xf32>
    %5 = arith.addf %2, %4 : vector<16x128xf32>
    %c0_5 = arith.constant 0 : index
    %c0_6 = arith.constant 0 : index
    %6 = vector.load %arg4[%c0_5, %c0_6] : memref<1x128xi32, #tpu.memory_space<vmem>>, vector<1x128xi32>
    %cst_7 = arith.constant 0.000000e+00 : f32
    %7 = vector.broadcast %cst_7 : f32 to vector<16x128xf32>
    %8 = arith.maximumf %5, %7 : vector<16x128xf32>
    %c1_i32 = arith.constant 1 : i32
    %9 = vector.broadcast %c1_i32 : i32 to vector<1x128xi32>
    %10 = arith.cmpi eq, %6, %9 : vector<1x128xi32>
    %11 = math.tanh %5 : vector<16x128xf32>
    %12 = vector.shape_cast %10 : vector<1x128xi1> to vector<1x128xi1>
    %13 = vector.broadcast %12 : vector<1x128xi1> to vector<16x128xi1>
    %14 = arith.select %13, %11, %8 : vector<16x128xi1>, vector<16x128xf32>
    %15 = arith.truncf %14 : vector<16x128xf32> to vector<16x128xbf16>
    %c0_8 = arith.constant 0 : index
    %c0_9 = arith.constant 0 : index
    %16 = vector.load %arg5[%c0_8, %c0_9] : memref<128x128xbf16, #tpu.memory_space<vmem>>, vector<128x128xbf16>
    %cst_10 = arith.constant dense<0.000000e+00> : vector<16x128xf32>
    %17 = tpu.matmul %15, %16, %cst_10 {dimension_numbers = #tpu.dot_dimension_numbers<[1], [0], [0], [1], [0, 0, 1, 1], [], []>} : vector<16x128xbf16>, vector<128x128xbf16>, vector<16x128xf32> -> vector<16x128xf32>
    %c0_11 = arith.constant 0 : index
    %c0_12 = arith.constant 0 : index
    %18 = vector.load %arg6[%c0_11, %c0_12] : memref<1x128xf32, #tpu.memory_space<vmem>>, vector<1x128xf32>
    %19 = vector.broadcast %18 : vector<1x128xf32> to vector<16x128xf32>
    %20 = arith.addf %17, %19 : vector<16x128xf32>
    %c0_13 = arith.constant 0 : index
    %c0_14 = arith.constant 0 : index
    %21 = vector.load %arg7[%c0_13, %c0_14] : memref<16x128xf32, #tpu.memory_space<vmem>>, vector<16x128xf32>
    tpu.vector_store %arg7[%c0_13, %c0_14], %20 {strides = array<i32>} : memref<16x128xf32, #tpu.memory_space<vmem>>, vector<16x128xf32>,
    return
  }
  func.func @transform_0(%arg0: i32) -> (i32, i32) {
    %c0_i32 = arith.constant 0 : i32
    %c0_i32_0 = arith.constant 0 : i32
    return %arg0, %c0_i32 : i32, i32
  }
  func.func @transform_1(%arg0: i32) -> (i32, i32) {
    %c0_i32 = arith.constant 0 : i32
    %c0_i32_0 = arith.constant 0 : i32
    %c0_i32_1 = arith.constant 0 : i32
    return %c0_i32, %c0_i32_0 : i32, i32
  }
  func.func @transform_2(%arg0: i32) -> (i32, i32) {
    %c0_i32 = arith.constant 0 : i32
    %c0_i32_0 = arith.constant 0 : i32
    %c0_i32_1 = arith.constant 0 : i32
    return %c0_i32, %c0_i32_0 : i32, i32
  }
  func.func @transform_3(%arg0: i32) -> (i32, i32) {
    %c0_i32 = arith.constant 0 : i32
    %c0_i32_0 = arith.constant 0 : i32
    %c0_i32_1 = arith.constant 0 : i32
    return %c0_i32, %c0_i32_0 : i32, i32
  }
  func.func @transform_4(%arg0: i32) -> (i32, i32) {
    %c0_i32 = arith.constant 0 : i32
    %c0_i32_0 = arith.constant 0 : i32
    %c0_i32_1 = arith.constant 0 : i32
    return %c0_i32, %c0_i32_0 : i32, i32
  }
  func.func @transform_5(%arg0: i32) -> (i32, i32) {
    %c0_i32 = arith.constant 0 : i32
    %c0_i32_0 = arith.constant 0 : i32
    %c0_i32_1 = arith.constant 0 : i32
    return %c0_i32, %c0_i32_0 : i32, i32
  }
  func.func @transform_6(%arg0: i32) -> (i32, i32) {
    %c0_i32 = arith.constant 0 : i32
    %c0_i32_0 = arith.constant 0 : i32
    return %arg0, %c0_i32 : i32, i32
  }
}

</mosaic_0001>

<llo_original>
// kernel: _pallas_forward.1
$region0: #{_pallas_forward.1}
  #allocation0 [shape = 'u32[]', space=smem, size = 0x4, offset = 0x4, fixed_abs, tag = 'smem constant byte address 0x4 - core index']
  #allocation1 [shape = 'u32[144,128]{1,0:T(1,128)}', space=vmem, size = 0x12000, scoped, tag = 'internal scratch']
  %s0 = inlined_call_operand.vmem [shape: bf16[16,16], index: 0, kind: input, shape index: {}]
  %s1 = inlined_call_operand.vmem [shape: bf16[16,128], index: 1, kind: input, shape index: {}]
  %s2 = inlined_call_operand.vmem [shape: f32[1,128], index: 2, kind: input, shape index: {}]
  %s3 = inlined_call_operand.vmem [shape: s32[1,128], index: 3, kind: input, shape index: {}]
  %s4 = inlined_call_operand.hbm [shape: bf16[128,128], index: 4, kind: input, shape index: {}]
  %s5 = inlined_call_operand.vmem [shape: f32[1,128], index: 5, kind: input, shape index: {}]
  %s6 = inlined_call_operand.vmem [shape: f32[16,128], index: 6, kind: output, shape index: {}]
  %s7 = sld [smem:[#allocation0]]
  $region38: #{_pallas_forward.1} parent=0
    _
  %s9 = ssub.s32 1, %s7
  %s10 = scalar_select 0, %s9, %s7
  $region1: #{_pallas_forward.1} parent=0
    #allocation2 [shape = 'u8[32768]{0}', space=vmem, size = 0x8000, scoped, tag = 'input window, operand 4, single buffered']
    #allocation3 [shape = 's32[1]{0}', space=sflag, size = 0x4, scoped, tag = 'scoped memory for _pallas_forward.1']
    %11 = vsyncpa [#allocation3], 0
    // Predicated region
    $region2: #{_pallas_forward.1} parent=1 // pred_check
      _
    $region3: #{_pallas_forward.1} parent=1 // pred_check_branch
      %13 = sbr.rel (0) target = $region5
    $region4: #{_pallas_forward.1} parent=1 // pred_region
      _
    $region5: #{_pallas_forward.1} parent=1 // pred_fallthru
      _
    // Predicated region
    $region6: #{_pallas_forward.1} parent=1 // pred_check
      _
    $region7: #{_pallas_forward.1} parent=1 // pred_check_branch
      %15 = sbr.rel (0) target = $region9
    $region8: #{_pallas_forward.1} parent=1 // pred_region
      _
    $region9: #{_pallas_forward.1} parent=1 // pred_fallthru
      _
    // Predicated region
    $region10: #{_pallas_forward.1} parent=1 // pred_check
      _
    $region11: #{_pallas_forward.1} parent=1 // pred_check_branch
      %17 = sbr.rel (0) target = $region13
    $region12: #{_pallas_forward.1} parent=1 // pred_region
      _
    $region13: #{_pallas_forward.1} parent=1 // pred_fallthru
      _
    // Predicated region
    $region14: #{_pallas_forward.1} parent=1 // pred_check
      _
    $region15: #{_pallas_forward.1} parent=1 // pred_check_branch
      %19 = sbr.rel (0) target = $region17
    $region16: #{_pallas_forward.1} parent=1 // pred_region
      _
    $region17: #{_pallas_forward.1} parent=1 // pred_fallthru
      _
    // Predicated region
    $region18: #{_pallas_forward.1} parent=1 // pred_check
      _
    $region19: #{_pallas_forward.1} parent=1 // pred_check_branch
      %21 = sbr.rel (0) target = $region21
    $region20: #{_pallas_forward.1} parent=1 // pred_region
      %s23 = ssub.s32 1024, 1024
      %24 = vsyncadd [#allocation3], %s23
      %s25 = sshll.u32 [#allocation2], 4
      %s26 = int_to_ptr.vmem [resolvable:$true] %s25
      %31 = dma.hbm_to_vmem [thread:$0]  %s4, 1024, %s26, [#allocation3], 64, 64, 4
    $region21: #{_pallas_forward.1} parent=1 // pred_fallthru
      _
    // Predicated region
    $region22: #{_pallas_forward.1} parent=1 // pred_check
      _
    $region23: #{_pallas_forward.1} parent=1 // pred_check_branch
      %33 = sbr.rel (0) target = $region25
    $region24: #{_pallas_forward.1} parent=1 // pred_region
      _
    $region25: #{_pallas_forward.1} parent=1 // pred_fallthru
      _
    // Predicated region
    $region26: #{_pallas_forward.1} parent=1 // pred_check
      _
    $region27: #{_pallas_forward.1} parent=1 // pred_check_branch
      %35 = sbr.rel (0) target = $region29
    $region28: #{_pallas_forward.1} parent=1 // pred_region
      %36 = dma.done [#allocation3], 1024
    $region29: #{_pallas_forward.1} parent=1 // pred_fallthru
      _
    %v38 = vld [vmem:[%s0] sm:$0xf]
    %v39 = vld [vmem:[%s0 + $0x4] sm:$0xf]
    %v40 = vld [vmem:[%s1] sm:$0xf]
    %v41 = vld [vmem:[%s1 + $0x4] sm:$0xf]
    %v42 = vld [vmem:[%s2] sm:$0x1]
    %v44 = vlaneseq
    %v45 = vshrl.u32 %v44, 7
    %v46 = vsub.s32 0, %v45
    %v47 = vrot.slane %v42, %v46
    %v51 = vunpack.c.l.b16 %v38
    %v52 = vunpack.c.l.b16 %v39
    %v53 = vpack.c.b16 %v52, %v51
    %v56 = vunpack.c.l.b16 %v40
    %v57 = vunpack.c.l.b16 %v41
    %v58 = vpack.c.b16 %v57, %v56
    %vm60 = vcmask 130048
    %v62 = vsel %vm60, %v53, 0
    %64 = vmatprep.subr.bf16.mxu0 0
    %65 = vmatpush1.bf16.msra.mxu0 0
    %66 = vmatprep.subr.bf16.mxu0 0
    %67 = vmatpush1.bf16.msra.mxu0 0
    %68 = vmatprep.subr.bf16.mxu0 0
    %69 = vmatpush1.bf16.msra.mxu0 0
    %70 = vmatprep.subr.bf16.mxu0 0
    %71 = vmatpush1.bf16.msra.mxu0 0
    %72 = vmatprep.subr.bf16.mxu0 0
    %73 = vmatpush1.bf16.msra.mxu0 0
    %74 = vmatprep.subr.bf16.mxu0 0
    %75 = vmatpush1.bf16.msra.mxu0 0
    %76 = vmatprep.subr.bf16.mxu0 0
    %77 = vmatpush1.bf16.msra.mxu0 0
    %78 = vmatprep.subr.bf16.mxu0 0
    %79 = vmatpush1.bf16.msra.mxu0 %v58
    %80 = vmatprep.subr.bf16.mxu0 0
    %81 = vmatpush2.bf16.msra.mxu0 0
    %82 = vmatprep.subr.bf16.mxu0 0
    %83 = vmatpush2.bf16.msra.mxu0 0
    %84 = vmatprep.subr.bf16.mxu0 0
    %85 = vmatpush2.bf16.msra.mxu0 0
    %86 = vmatprep.subr.bf16.mxu0 0
    %87 = vmatpush2.bf16.msra.mxu0 0
    %88 = vmatprep.subr.bf16.mxu0 0
    %89 = vmatpush2.bf16.msra.mxu0 0
    %90 = vmatprep.subr.bf16.mxu0 0
    %91 = vmatpush2.bf16.msra.mxu0 0
    %92 = vmatprep.subr.bf16.mxu0 0
    %93 = vmatpush2.bf16.msra.mxu0 0
    %94 = vmatprep.subr.bf16.mxu0 0
    %95 = vmatpush2.bf16.msra.mxu0 0
    %96 = vmatprep.mubr.bf16.mxu0 0
    %97 = vmatmul.mubr.bf16.gmra.mxu0 %v62
    %v98 = vpop.f32.mrf.mxu0
    %v99 = vadd.f32 %v47, %v98
    %v100 = vpop.f32.mrf.mxu0
    %v101 = vpop.f32.mrf.mxu0
    %v102 = vadd.f32 %v47, %v101
    %v103 = vpop.f32.mrf.mxu0
    %104 = vdwg.mxu0
    %v105 = vld [vmem:[%s3] sm:$0x1]
    %v106 = vmax.f32 %v99, 0.0
    %v107 = vmax.f32 %v102, 0.0
    %vm108 = vcmp.eq.s32.totalorder %v105, 1
    %v109 = vtanh.pop %v99
    %v110 = vtanh.pop %v102
    %v111 = vsel %vm108, 1, 0
    %v112 = vlaneseq
    %v113 = vshrl.u32 %v112, 7
    %v114 = vsub.s32 0, %v113
    %v115 = vrot.slane %v111, %v114
    %vm116 = vcmp.eq.s32.totalorder %v115, 1
    %v117 = vsel %vm116, %v109, %v106
    %v118 = vsel %vm116, %v110, %v107
    %v119 = vpack.c.bf16 %v118, %v117
    %v120 = vld [vmem:[#allocation2] sm:$0xf]
    %v121 = vld [vmem:[#allocation2 + $0x4] sm:$0xf]
    %v122 = vld [vmem:[#allocation2 + $0x8] sm:$0xf]
    %v123 = vld [vmem:[#allocation2 + $0xc] sm:$0xf]
    %v124 = vld [vmem:[#allocation2 + $0x10] sm:$0xf]
    %v125 = vld [vmem:[#allocation2 + $0x14] sm:$0xf]
    %v126 = vld [vmem:[#allocation2 + $0x18] sm:$0xf]
    %v127 = vld [vmem:[#allocation2 + $0x1c] sm:$0xf]
    %v128 = vld [vmem:[#allocation2 + $0x20] sm:$0xf]
    %v129 = vld [vmem:[#allocation2 + $0x24] sm:$0xf]
    %v130 = vld [vmem:[#allocation2 + $0x28] sm:$0xf]
    %v131 = vld [vmem:[#allocation2 + $0x2c] sm:$0xf]
    %v132 = vld [vmem:[#allocation2 + $0x30] sm:$0xf]
    %v133 = vld [vmem:[#allocation2 + $0x34] sm:$0xf]
    %v134 = vld [vmem:[#allocation2 + $0x38] sm:$0xf]
    %v135 = vld [vmem:[#allocation2 + $0x3c] sm:$0xf]
    %v136 = vld [vmem:[%s5] sm:$0x1]
    %v138 = vlaneseq
    %v139 = vshrl.u32 %v138, 7
    %v140 = vsub.s32 0, %v139
    %v141 = vrot.slane %v136, %v140
    %v159 = vunpack.c.l.b16 %v120
    %v160 = vunpack.c.l.b16 %v121
    %v161 = vunpack.c.l.b16 %v122
    %v162 = vunpack.c.l.b16 %v123
    %v163 = vunpack.c.l.b16 %v124
    %v164 = vunpack.c.l.b16 %v125
    %v165 = vunpack.c.l.b16 %v126
    %v166 = vunpack.c.l.b16 %v127
    %v167 = vunpack.c.l.b16 %v128
    %v168 = vunpack.c.l.b16 %v129
    %v169 = vunpack.c.l.b16 %v130
    %v170 = vunpack.c.l.b16 %v131
    %v171 = vunpack.c.l.b16 %v132
    %v172 = vunpack.c.l.b16 %v133
    %v173 = vunpack.c.l.b16 %v134
    %v174 = vunpack.c.l.b16 %v135
    %v175 = vpack.c.b16 %v160, %v159
    %v176 = vpack.c.b16 %v162, %v161
    %v177 = vpack.c.b16 %v164, %v163
    %v178 = vpack.c.b16 %v166, %v165
    %v179 = vpack.c.b16 %v168, %v167
    %v180 = vpack.c.b16 %v170, %v169
    %v181 = vpack.c.b16 %v172, %v171
    %v182 = vpack.c.b16 %v174, %v173
    %191 = vmatprep.subr.bf16.mxu0 0
    %192 = vmatpush1.bf16.msra.mxu0 %v182
    %193 = vmatprep.subr.bf16.mxu0 0
    %194 = vmatpush1.bf16.msra.mxu0 %v181
    %195 = vmatprep.subr.bf16.mxu0 0
    %196 = vmatpush1.bf16.msra.mxu0 %v180
    %197 = vmatprep.subr.bf16.mxu0 0
    %198 = vmatpush1.bf16.msra.mxu0 %v179
    %199 = vmatprep.subr.bf16.mxu0 0
    %200 = vmatpush1.bf16.msra.mxu0 %v178
    %201 = vmatprep.subr.bf16.mxu0 0
    %202 = vmatpush1.bf16.msra.mxu0 %v177
    %203 = vmatprep.subr.bf16.mxu0 0
    %204 = vmatpush1.bf16.msra.mxu0 %v176
    %205 = vmatprep.subr.bf16.mxu0 0
    %206 = vmatpush1.bf16.msra.mxu0 %v175
    %207 = vmatprep.subr.bf16.mxu0 0
    %208 = vmatpush2.bf16.msra.mxu0 0
    %209 = vmatprep.subr.bf16.mxu0 0
    %210 = vmatpush2.bf16.msra.mxu0 0
    %211 = vmatprep.subr.bf16.mxu0 0
    %212 = vmatpush2.bf16.msra.mxu0 0
    %213 = vmatprep.subr.bf16.mxu0 0
    %214 = vmatpush2.bf16.msra.mxu0 0
    %215 = vmatprep.subr.bf16.mxu0 0
    %216 = vmatpush2.bf16.msra.mxu0 0
    %217 = vmatprep.subr.bf16.mxu0 0
    %218 = vmatpush2.bf16.msra.mxu0 0
    %219 = vmatprep.subr.bf16.mxu0 0
    %220 = vmatpush2.bf16.msra.mxu0 0
    %221 = vmatprep.subr.bf16.mxu0 0
    %222 = vmatpush2.bf16.msra.mxu0 0
    %223 = vmatprep.mubr.bf16.mxu0 0
    %224 = vmatmul.mubr.bf16.gmra.mxu0 %v119
    %v225 = vpop.f32.mrf.mxu0
    %v226 = vadd.f32 %v141, %v225
    %v227 = vpop.f32.mrf.mxu0
    %v228 = vpop.f32.mrf.mxu0
    %v229 = vadd.f32 %v141, %v228
    %v230 = vpop.f32.mrf.mxu0
    %231 = vdwg.mxu0
    %232 = vst [vmem:[%s6] sm:$0xff] %v226
    %233 = vst [vmem:[%s6 + $0x8] sm:$0xff] %v229
    // Predicated region
    $region30: #{_pallas_forward.1} parent=1 // pred_check
      _
    $region31: #{_pallas_forward.1} parent=1 // pred_check_branch
      %235 = sbr.rel (0) target = $region33
    $region32: #{_pallas_forward.1} parent=1 // pred_region
      _
    $region33: #{_pallas_forward.1} parent=1 // pred_fallthru
      _
    // Predicated region
    $region34: #{_pallas_forward.1} parent=1 // pred_check
      _
    $region35: #{_pallas_forward.1} parent=1 // pred_check_branch
      %237 = sbr.rel (0) target = $region37
    $region36: #{_pallas_forward.1} parent=1 // pred_region
      _
    $region37: #{_pallas_forward.1} parent=1 // pred_fallthru
      _
    %238 = vsyncpa [#allocation3], 1

// kernel: _pallas_forward.1
$region0: #{_pallas_forward.1}
  #allocation0 [shape = 'u32[]', space=smem, size = 0x4, offset = 0x4, fixed_abs, tag = 'smem constant byte address 0x4 - core index']
  #allocation1 [shape = 'u32[144,128]{1,0:T(1,128)}', space=vmem, size = 0x12000, scoped, tag = 'internal scratch']
  %s0 = inlined_call_operand.vmem [shape: bf16[16,16], index: 0, kind: input, shape index: {}]
  %s1 = inlined_call_operand.vmem [shape: bf16[16,128], index: 1, kind: input, shape index: {}]
  %s2 = inlined_call_operand.vmem [shape: f32[1,128], index: 2, kind: input, shape index: {}]
  %s3 = inlined_call_operand.vmem [shape: s32[1,128], index: 3, kind: input, shape index: {}]
  %s4 = inlined_call_operand.hbm [shape: bf16[128,128], index: 4, kind: input, shape index: {}]
  %s5 = inlined_call_operand.vmem [shape: f32[1,128], index: 5, kind: input, shape index: {}]
  %s6 = inlined_call_operand.vmem [shape: f32[16,128], index: 6, kind: output, shape index: {}]
  %s7 = sld [smem:[#allocation0]]
  $region38: #{_pallas_forward.1} parent=0
    _
  %s9 = ssub.s32 1, %s7
  %s10 = scalar_select 0, %s9, %s7
  $region1: #{_pallas_forward.1} parent=0
    #allocation2 [shape = 'u8[32768]{0}', space=vmem, size = 0x8000, scoped, tag = 'input window, operand 4, single buffered']
    #allocation3 [shape = 's32[1]{0}', space=sflag, size = 0x4, scoped, tag = 'scoped memory for _pallas_forward.1']
    %11 = vsyncpa [#allocation3], 0
    // Predicated region
    $region2: #{_pallas_forward.1} parent=1 // pred_check
      _
    $region3: #{_pallas_forward.1} parent=1 // pred_check_branch
      %13 = sbr.rel (0) target = $region5
    $region4: #{_pallas_forward.1} parent=1 // pred_region
      _
    $region5: #{_pallas_forward.1} parent=1 // pred_fallthru
      _
    // Predicated region
    $region6: #{_pallas_forward.1} parent=1 // pred_check
      _
    $region7: #{_pallas_forward.1} parent=1 // pred_check_branch
      %15 = sbr.rel (0) target = $region9
    $region8: #{_pallas_forward.1} parent=1 // pred_region
      _
    $region9: #{_pallas_forward.1} parent=1 // pred_fallthru
      _
    // Predicated region
    $region10: #{_pallas_forward.1} parent=1 // pred_check
      _
    $region11: #{_pallas_forward.1} parent=1 // pred_check_branch
      %17 = sbr.rel (0) target = $region13
    $region12: #{_pallas_forward.1} parent=1 // pred_region
      _
    $region13: #{_pallas_forward.1} parent=1 // pred_fallthru
      _
    // Predicated region
    $region14: #{_pallas_forward.1} parent=1 // pred_check
      _
    $region15: #{_pallas_forward.1} parent=1 // pred_check_branch
      %19 = sbr.rel (0) target = $region17
    $region16: #{_pallas_forward.1} parent=1 // pred_region
      _
    $region17: #{_pallas_forward.1} parent=1 // pred_fallthru
      _
    // Predicated region
    $region18: #{_pallas_forward.1} parent=1 // pred_check
      _
    $region19: #{_pallas_forward.1} parent=1 // pred_check_branch
      %21 = sbr.rel (0) target = $region21
    $region20: #{_pallas_forward.1} parent=1 // pred_region
      %s23 = ssub.s32 1024, 1024
      %24 = vsyncadd [#allocation3], %s23
      %s25 = sshll.u32 [#allocation2], 4
      %s26 = int_to_ptr.vmem [resolvable:$true] %s25
      %31 = dma.hbm_to_vmem [thread:$0]  %s4, 1024, %s26, [#allocation3], 64, 64, 4
    $region21: #{_pallas_forward.1} parent=1 // pred_fallthru
      _
    // Predicated region
    $region22: #{_pallas_forward.1} parent=1 // pred_check
      _
    $region23: #{_pallas_forward.1} parent=1 // pred_check_branch
      %33 = sbr.rel (0) target = $region25
    $region24: #{_pallas_forward.1} parent=1 // pred_region
      _
    $region25: #{_pallas_forward.1} parent=1 // pred_fallthru
      _
    // Predicated region
    $region26: #{_pallas_forward.1} parent=1 // pred_check
      _
    $region27: #{_pallas_forward.1} parent=1 // pred_check_branch
      %35 = sbr.rel (0) target = $region29
    $region28: #{_pallas_forward.1} parent=1 // pred_region
      %36 = dma.done [#allocation3], 1024
    $region29: #{_pallas_forward.1} parent=1 // pred_fallthru
      _
    %v38 = vld [vmem:[%s0] sm:$0xf]
    %v39 = vld [vmem:[%s0 + $0x4] sm:$0xf]
    %v40 = vld [vmem:[%s1] sm:$0xf]
    %v41 = vld [vmem:[%s1 + $0x4] sm:$0xf]
    %v42 = vld [vmem:[%s2] sm:$0x1]
    %v44 = vlaneseq
    %v45 = vshrl.u32 %v44, 7
    %v46 = vsub.s32 0, %v45
    %v47 = vrot.slane %v42, %v46
    %v51 = vunpack.c.l.b16 %v38
    %v52 = vunpack.c.l.b16 %v39
    %v53 = vpack.c.b16 %v52, %v51
    %v56 = vunpack.c.l.b16 %v40
    %v57 = vunpack.c.l.b16 %v41
    %v58 = vpack.c.b16 %v57, %v56
    %vm60 = vcmask 130048
    %v62 = vsel %vm60, %v53, 0
    %64 = vmatprep.subr.bf16.mxu0 0
    %65 = vmatpush1.bf16.msra.mxu0 0
    %66 = vmatprep.subr.bf16.mxu0 0
    %67 = vmatpush1.bf16.msra.mxu0 0
    %68 = vmatprep.subr.bf16.mxu0 0
    %69 = vmatpush1.bf16.msra.mxu0 0
    %70 = vmatprep.subr.bf16.mxu0 0
    %71 = vmatpush1.bf16.msra.mxu0 0
    %72 = vmatprep.subr.bf16.mxu0 0
    %73 = vmatpush1.bf16.msra.mxu0 0
    %74 = vmatprep.subr.bf16.mxu0 0
    %75 = vmatpush1.bf16.msra.mxu0 0
    %76 = vmatprep.subr.bf16.mxu0 0
    %77 = vmatpush1.bf16.msra.mxu0 0
    %78 = vmatprep.subr.bf16.mxu0 0
    %79 = vmatpush1.bf16.msra.mxu0 %v58
    %80 = vmatprep.subr.bf16.mxu0 0
    %81 = vmatpush2.bf16.msra.mxu0 0
    %82 = vmatprep.subr.bf16.mxu0 0
    %83 = vmatpush2.bf16.msra.mxu0 0
    %84 = vmatprep.subr.bf16.mxu0 0
    %85 = vmatpush2.bf16.msra.mxu0 0
    %86 = vmatprep.subr.bf16.mxu0 0
    %87 = vmatpush2.bf16.msra.mxu0 0
    %88 = vmatprep.subr.bf16.mxu0 0
    %89 = vmatpush2.bf16.msra.mxu0 0
    %90 = vmatprep.subr.bf16.mxu0 0
    %91 = vmatpush2.bf16.msra.mxu0 0
    %92 = vmatprep.subr.bf16.mxu0 0
    %93 = vmatpush2.bf16.msra.mxu0 0
    %94 = vmatprep.subr.bf16.mxu0 0
    %95 = vmatpush2.bf16.msra.mxu0 0
    %96 = vmatprep.mubr.bf16.mxu0 0
    %97 = vmatmul.mubr.bf16.gmra.mxu0 %v62
    %v98 = vpop.f32.mrf.mxu0
    %v99 = vadd.f32 %v47, %v98
    %v100 = vpop.f32.mrf.mxu0
    %v101 = vpop.f32.mrf.mxu0
    %v102 = vadd.f32 %v47, %v101
    %v103 = vpop.f32.mrf.mxu0
    %104 = vdwg.mxu0
    %v105 = vld [vmem:[%s3] sm:$0x1]
    %v106 = vmax.f32 %v99, 0.0
    %v107 = vmax.f32 %v102, 0.0
    %vm108 = vcmp.eq.s32.totalorder %v105, 1
    %v109 = vtanh.pop %v99
    %v110 = vtanh.pop %v102
    %v111 = vsel %vm108, 1, 0
    %v112 = vlaneseq
    %v113 = vshrl.u32 %v112, 7
    %v114 = vsub.s32 0, %v113
    %v115 = vrot.slane %v111, %v114
    %vm116 = vcmp.eq.s32.totalorder %v115, 1
    %v117 = vsel %vm116, %v109, %v106
    %v118 = vsel %vm116, %v110, %v107
    %v119 = vpack.c.bf16 %v118, %v117
    %v120 = vld [vmem:[#allocation2] sm:$0xf]
    %v121 = vld [vmem:[#allocation2 + $0x4] sm:$0xf]
    %v122 = vld [vmem:[#allocation2 + $0x8] sm:$0xf]
    %v123 = vld [vmem:[#allocation2 + $0xc] sm:$0xf]
    %v124 = vld [vmem:[#allocation2 + $0x10] sm:$0xf]
    %v125 = vld [vmem:[#allocation2 + $0x14] sm:$0xf]
    %v126 = vld [vmem:[#allocation2 + $0x18] sm:$0xf]
    %v127 = vld [vmem:[#allocation2 + $0x1c] sm:$0xf]
    %v128 = vld [vmem:[#allocation2 + $0x20] sm:$0xf]
    %v129 = vld [vmem:[#allocation2 + $0x24] sm:$0xf]
    %v130 = vld [vmem:[#allocation2 + $0x28] sm:$0xf]
    %v131 = vld [vmem:[#allocation2 + $0x2c] sm:$0xf]
    %v132 = vld [vmem:[#allocation2 + $0x30] sm:$0xf]
    %v133 = vld [vmem:[#allocation2 + $0x34] sm:$0xf]
    %v134 = vld [vmem:[#allocation2 + $0x38] sm:$0xf]
    %v135 = vld [vmem:[#allocation2 + $0x3c] sm:$0xf]
    %v136 = vld [vmem:[%s5] sm:$0x1]
    %v138 = vlaneseq
    %v139 = vshrl.u32 %v138, 7
    %v140 = vsub.s32 0, %v139
    %v141 = vrot.slane %v136, %v140
    %v159 = vunpack.c.l.b16 %v120
    %v160 = vunpack.c.l.b16 %v121
    %v161 = vunpack.c.l.b16 %v122
    %v162 = vunpack.c.l.b16 %v123
    %v163 = vunpack.c.l.b16 %v124
    %v164 = vunpack.c.l.b16 %v125
    %v165 = vunpack.c.l.b16 %v126
    %v166 = vunpack.c.l.b16 %v127
    %v167 = vunpack.c.l.b16 %v128
    %v168 = vunpack.c.l.b16 %v129
    %v169 = vunpack.c.l.b16 %v130
    %v170 = vunpack.c.l.b16 %v131
    %v171 = vunpack.c.l.b16 %v132
    %v172 = vunpack.c.l.b16 %v133
    %v173 = vunpack.c.l.b16 %v134
    %v174 = vunpack.c.l.b16 %v135
    %v175 = vpack.c.b16 %v160, %v159
    %v176 = vpack.c.b16 %v162, %v161
    %v177 = vpack.c.b16 %v164, %v163
    %v178 = vpack.c.b16 %v166, %v165
    %v179 = vpack.c.b16 %v168, %v167
    %v180 = vpack.c.b16 %v170, %v169
    %v181 = vpack.c.b16 %v172, %v171
    %v182 = vpack.c.b16 %v174, %v173
    %191 = vmatprep.subr.bf16.mxu0 0
    %192 = vmatpush1.bf16.msra.mxu0 %v182
    %193 = vmatprep.subr.bf16.mxu0 0
    %194 = vmatpush1.bf16.msra.mxu0 %v181
    %195 = vmatprep.subr.bf16.mxu0 0
    %196 = vmatpush1.bf16.msra.mxu0 %v180
    %197 = vmatprep.subr.bf16.mxu0 0
    %198 = vmatpush1.bf16.msra.mxu0 %v179
    %199 = vmatprep.subr.bf16.mxu0 0
    %200 = vmatpush1.bf16.msra.mxu0 %v178
    %201 = vmatprep.subr.bf16.mxu0 0
    %202 = vmatpush1.bf16.msra.mxu0 %v177
    %203 = vmatprep.subr.bf16.mxu0 0
    %204 = vmatpush1.bf16.msra.mxu0 %v176
    %205 = vmatprep.subr.bf16.mxu0 0
    %206 = vmatpush1.bf16.msra.mxu0 %v175
    %207 = vmatprep.subr.bf16.mxu0 0
    %208 = vmatpush2.bf16.msra.mxu0 0
    %209 = vmatprep.subr.bf16.mxu0 0
    %210 = vmatpush2.bf16.msra.mxu0 0
    %211 = vmatprep.subr.bf16.mxu0 0
    %212 = vmatpush2.bf16.msra.mxu0 0
    %213 = vmatprep.subr.bf16.mxu0 0
    %214 = vmatpush2.bf16.msra.mxu0 0
    %215 = vmatprep.subr.bf16.mxu0 0
    %216 = vmatpush2.bf16.msra.mxu0 0
    %217 = vmatprep.subr.bf16.mxu0 0
    %218 = vmatpush2.bf16.msra.mxu0 0
    %219 = vmatprep.subr.bf16.mxu0 0
    %220 = vmatpush2.bf16.msra.mxu0 0
    %221 = vmatprep.subr.bf16.mxu0 0
    %222 = vmatpush2.bf16.msra.mxu0 0
    %223 = vmatprep.mubr.bf16.mxu0 0
    %224 = vmatmul.mubr.bf16.gmra.mxu0 %v119
    %v225 = vpop.f32.mrf.mxu0
    %v226 = vadd.f32 %v141, %v225
    %v227 = vpop.f32.mrf.mxu0
    %v228 = vpop.f32.mrf.mxu0
    %v229 = vadd.f32 %v141, %v228
    %v230 = vpop.f32.mrf.mxu0
    %231 = vdwg.mxu0
    %232 = vst [vmem:[%s6] sm:$0xff] %v226
    %233 = vst [vmem:[%s6 + $0x8] sm:$0xff] %v229
    // Predicated region
    $region30: #{_pallas_forward.1} parent=1 // pred_check
      _
    $region31: #{_pallas_forward.1} parent=1 // pred_check_branch
      %235 = sbr.rel (0) target = $region33
    $region32: #{_pallas_forward.1} parent=1 // pred_region
      _
    $region33: #{_pallas_forward.1} parent=1 // pred_fallthru
      _
    // Predicated region
    $region34: #{_pallas_forward.1} parent=1 // pred_check
      _
    $region35: #{_pallas_forward.1} parent=1 // pred_check_branch
      %237 = sbr.rel (0) target = $region37
    $region36: #{_pallas_forward.1} parent=1 // pred_region
      _
    $region37: #{_pallas_forward.1} parent=1 // pred_fallthru
      _
    %238 = vsyncpa [#allocation3], 1

</llo_original>
